<compile_context>
chip_gen: v5e
topology: v5e:2x2
jax: 0.10.0
libtpu: 0.0.40
codegen_flags: <defaults>
</compile_context>

<pallas_src>
import jax
import jax.numpy as jnp
import numpy as np
from jax.experimental import pallas as pl
from jax.experimental.pallas import tpu as pltpu

# Only bother splitting the copy into multiple DMAs for multi-MiB arrays;
# below this a single descriptor already saturates (and has least overhead).
_SPLIT_BYTES_THRESHOLD = 4 * 1024 * 1024
_MAX_SLICES = 4


def _whole_array_copy_kernel(x_ref, o_ref, sem):
    # Single direct HBM->HBM DMA of the full array.
    cp = pltpu.make_async_copy(x_ref, o_ref, sem.at[0])
    cp.start()
    cp.wait()


def _make_sliced_copy_kernel(slice_bounds):
    """HBM->HBM copy issuing one DMA per static (start, size) slice of axis 0.

    All DMAs are started before any wait so they overlap on the DMA engines.
    """
    def kernel(x_ref, o_ref, sem):
        copies = []
        for i, (start, size) in enumerate(slice_bounds):
            cp = pltpu.make_async_copy(
                x_ref.at[pl.ds(start, size)],
                o_ref.at[pl.ds(start, size)],
                sem.at[i],
            )
            cp.start()
            copies.append(cp)
        for cp in copies:
            cp.wait()
    return kernel


def _slice_bounds(rows, num_slices):
    """Static, contiguous, near-equal split of `rows` into <= num_slices chunks."""
    num_slices = max(1, min(int(num_slices), int(rows)))
    base, rem = divmod(rows, num_slices)
    bounds, start = [], 0
    for i in range(num_slices):
        size = base + (1 if i < rem else 0)
        if size > 0:
            bounds.append((start, size))
            start += size
    return bounds


def dma_copy(x, num_slices=None):
    """Materialized copy of `x` via direct HBM->HBM DMA (no VMEM round-trip)."""
    itemsize = jnp.dtype(x.dtype).itemsize
    total = int(np.prod(x.shape)) if x.ndim else 1
    total_bytes = total * itemsize

    if x.ndim == 0:
        n = 1
    elif num_slices is not None:
        n = int(num_slices)
    elif total_bytes >= _SPLIT_BYTES_THRESHOLD:
        n = _MAX_SLICES
    else:
        n = 1

    if x.ndim == 0 or n <= 1:
        kernel = _whole_array_copy_kernel
        n_sems = 1
    else:
        bounds = _slice_bounds(x.shape[0], n)
        kernel = _make_sliced_copy_kernel(bounds)
        n_sems = len(bounds)

    return pl.pallas_call(
        kernel,
        out_shape=jax.ShapeDtypeStruct(x.shape, x.dtype),
        in_specs=[pl.BlockSpec(memory_space=pl.ANY)],
        out_specs=pl.BlockSpec(memory_space=pl.ANY),
        scratch_shapes=[pltpu.SemaphoreType.DMA((n_sems,))],
        cost_estimate=pl.CostEstimate(
            flops=0, transcendentals=0, bytes_accessed=2 * total_bytes),
    )(x)


def identity_encoder_forward(obs, detach=False, materialize_copy=False):
    """IdentityEncoder.forward.  `detach` only affects autograd in PyTorch, so
    it has no effect on forward values.  Default path is zero-cost `return obs`;
    set materialize_copy=True to get a fresh HBM buffer via the DMA kernel."""
    if materialize_copy:
        return dma_copy(obs)
    return obs


class IdentityEncoder:
    """JAX/Pallas counterpart of the PyTorch IdentityEncoder."""

    def __init__(self, obs_shape, feature_dim, num_layers, num_filters,
                 *args, two_conv=False, materialize_copy=False):
        assert len(obs_shape) == 1
        # Mirrors the PyTorch module: feature_dim is taken from obs_shape.
        self.feature_dim = obs_shape[0]
        self.materialize_copy = materialize_copy

    def __call__(self, obs, detach=False):
        return identity_encoder_forward(
            obs, detach=detach, materialize_copy=self.materialize_copy)

    def copy_conv_weights_from(self, source):
        pass

    def log(self, L, step, log_networks, log_freq):
        pass


if __name__ == "__main__":
    key = jax.random.PRNGKey(0)

    # obs is (batch, feature_dim) as implied by the 1-D obs_shape assert.
    batch, feature_dim = 8, 32
    obs = jax.random.normal(key, (batch, feature_dim), dtype=jnp.float32)
    obs_host = np.asarray(jax.device_get(obs))

    # 1) Materialized-copy path (single HBM->HBM DMA).
    enc_copy = IdentityEncoder((feature_dim,), feature_dim=50, num_layers=2,
                               num_filters=32, materialize_copy=True)
    out = jax.block_until_ready(enc_copy(obs))
    assert out.shape == obs_host.shape and out.dtype == obs.dtype
    assert np.array_equal(np.asarray(jax.device_get(out)), obs_host)
    # No aliasing/donation: obs must still be readable and unchanged.
    assert np.array_equal(np.asarray(jax.device_get(obs)), obs_host)

    # 2) Default production path: zero-cost identity (no kernel).
    enc_fast = IdentityEncoder((feature_dim,), feature_dim=50,
                               num_layers=2, num_filters=32)
    out_fast = jax.block_until_ready(enc_fast(obs))
    assert np.array_equal(np.asarray(jax.device_get(out_fast)), obs_host)

    # 3) Non-128-divisible shapes need no special casing on the DMA path.
    obs2 = jax.random.normal(jax.random.PRNGKey(1), (4, 24), dtype=jnp.float32)
    obs2_host = np.asarray(jax.device_get(obs2))
    out2 = jax.block_until_ready(dma_copy(obs2))
    assert out2.shape == obs2_host.shape
    assert np.array_equal(np.asarray(jax.device_get(out2)), obs2_host)

    # 4) Multi-slice (multi-DMA) variant, forced at a small shape.
    out3 = jax.block_until_ready(dma_copy(obs, num_slices=2))
    assert np.array_equal(np.asarray(jax.device_get(out3)), obs_host)

    print("KERNEL_OK")
</pallas_src>

<mosaic_0001>
module attributes {stable_mosaic.version = 11 : i64} {
  func.func @_whole_array_copy_kernel(%arg0: memref<8x32xf32, #tpu.memory_space<any>>, %arg1: memref<8x32xf32, #tpu.memory_space<any>>, %arg2: memref<1x!tpu.dma_semaphore, #tpu.memory_space<semaphore_mem>>) attributes {dimension_semantics = [], scalar_prefetch = 0 : i64, scratch_operands = 1 : i64, tpu.core_type = #tpu.core_type<tc>} {
    %c0_i32 = arith.constant 0 : i32
    %0 = tpu.memref_slice %arg2[%c0_i32] : memref<1x!tpu.dma_semaphore, #tpu.memory_space<semaphore_mem>> -> memref<1x!tpu.dma_semaphore, #tpu.memory_space<semaphore_mem>>
    %1 = tpu.memref_squeeze %0 : memref<1x!tpu.dma_semaphore, #tpu.memory_space<semaphore_mem>> -> memref<!tpu.dma_semaphore, #tpu.memory_space<semaphore_mem>>
    tpu.enqueue_dma source(%arg0 : memref<8x32xf32, #tpu.memory_space<any>>) target(%arg1 : memref<8x32xf32, #tpu.memory_space<any>>) target_semaphore(%1 : memref<!tpu.dma_semaphore, #tpu.memory_space<semaphore_mem>>)
    %c0_i32_0 = arith.constant 0 : i32
    %2 = tpu.memref_slice %arg2[%c0_i32_0] : memref<1x!tpu.dma_semaphore, #tpu.memory_space<semaphore_mem>> -> memref<1x!tpu.dma_semaphore, #tpu.memory_space<semaphore_mem>>
    %3 = tpu.memref_squeeze %2 : memref<1x!tpu.dma_semaphore, #tpu.memory_space<semaphore_mem>> -> memref<!tpu.dma_semaphore, #tpu.memory_space<semaphore_mem>>
    tpu.wait_dma2 semaphore(%3 : memref<!tpu.dma_semaphore, #tpu.memory_space<semaphore_mem>>) src(%arg0 : memref<8x32xf32, #tpu.memory_space<any>>) dst(%arg1 : memref<8x32xf32, #tpu.memory_space<any>>)
    return
  }
}

</mosaic_0001>

<llo_original>
// kernel: tpu_custom_call.1
$region0: #{tpu_custom_call.1}
  #allocation0 [shape = 'u32[]', space=smem, size = 0x4, offset = 0x4, fixed_abs, tag = 'smem constant byte address 0x4 - core index']
  #allocation1 [shape = 'u32[72,128]{1,0:T(1,128)}', space=vmem, size = 0x9000, scoped, tag = 'internal scratch']
  #allocation2 [shape = 's32[1]{0}', space=sflag, size = 0x4, scoped, tag = 'scratch operand']
  #allocation3 [shape = 's32[]', space=sflag, size = 0x4, offset = 0, fixed_abs, tag = 'sflag constant byte address 0x0 - dummy sync flag']
  #allocation4 [shape = 'u32[0]{0}', space=smem, size = 0, offset = 0, fixed_abs, tag = 'smem constant byte address 0x0 - null']
  %s0 = inlined_call_operand.hbm [shape: f32[8,32], index: 0, kind: input, shape index: {}]
  %s1 = inlined_call_operand.hbm [shape: f32[8,32], index: 1, kind: output, shape index: {}]
  %s2 = sld [smem:[#allocation0]]
  $region2: #{tpu_custom_call.1} parent=0
    _
  %s4 = ssub.s32 1, %s2
  %s5 = scalar_select 0, %s4, %s2
  %s7 = sshll.u32 1, 14
  %s8 = sxor.u32 4294967295, %s7
  %s10 = sshll.u32 %s0, 4
  %s11 = int_to_ptr.hbm [resolvable:$true] %s10
  %s12 = sshll.u32 %s1, 4
  %s13 = int_to_ptr.hbm [resolvable:$true] %s12
  %16 = dma.general %s11, 128, %s13, [#allocation2], [#allocation3], [#allocation4], 0, 0
  %s17 = smul.u32 8, 1
  %s18 = sshll.u32 %s17, 4
  %19 = dma.done [#allocation2], %s18
  %20 = vsyncmov [#allocation2]
  %s21 = vpop.sfrf %20
  %p22 = scmp.eq.s32.totalorder %s21, 0
  %p23 = pneg %p22
  %25 = shalt.err (%p23)

</llo_original>
